<compile_context>
chip_gen: v7x
topology: tpu7x:2x2x1
jax: 0.10.0
libtpu: 0.0.40
codegen_flags: <defaults>
</compile_context>

<pallas_src>
import functools

import jax
import jax.numpy as jnp
from jax import lax
from jax.experimental import pallas as pl
from jax.experimental.pallas import tpu as pltpu

LEAKY_SLOPE = 0.2
BN_EPS = 1e-5


def _leaky_relu(x, slope=LEAKY_SLOPE):
    return jnp.where(x > 0, x, slope * x)


def _round_up(x, m):
    return ((x + m - 1) // m) * m


@functools.lru_cache(maxsize=1)
def _default_config():
    """Generation-aware pixel-tile size, scoped-VMEM budget, matmul precision."""
    kind = ""
    try:
        kind = jax.devices()[0].device_kind.lower()
    except Exception:
        pass
    if "v5 lite" in kind or "v5lite" in kind or "v5e" in kind:
        # v5e: 128 MiB physical VMEM but 16 MiB default scoped limit; no bf16 VPU
        # and a 128x128 MXU -> keep f32 matmul, just raise the scoped budget.
        return {"tm": 8192, "vmem_limit": 64 << 20, "bf16": False}
    if "v6" in kind:
        # v6e: 256x256 bf16-native MXU; f32 matmul is emulated -> bf16 dot inputs.
        return {"tm": 8192, "vmem_limit": 48 << 20, "bf16": True}
    if "v7" in kind or "tpu7" in kind:
        # v7x: only 64 MiB VMEM per TensorCore -> cap the budget; bf16-only MXU.
        return {"tm": 8192, "vmem_limit": 48 << 20, "bf16": True}
    # Unknown / older generation: conservative known-good settings.
    return {"tm": 4096, "vmem_limit": 32 << 20, "bf16": False}


# ---------------------------------------------------------------------------
# Pass 1: per-batch-element, per-channel sum and sum-of-squares of z2 (pre-BN)
# ---------------------------------------------------------------------------
def _stats_kernel(x_ref, w1_ref, b1_ref, w2_ref, b2_ref, sum_ref, sumsq_ref,
                  *, n_pad, tm):
    t = pl.program_id(1)

    @pl.when(t == 0)
    def _():
        sum_ref[...] = jnp.zeros_like(sum_ref)
        sumsq_ref[...] = jnp.zeros_like(sumsq_ref)

    x = x_ref[...]                         # (C, TM): pixels on lanes
    w1 = w1_ref[...]

    # Conv2d(input_nc, ndf, 1) + LeakyReLU  (f32 accumulation regardless of dtype)
    h1 = jnp.dot(w1, x.astype(w1.dtype), preferred_element_type=jnp.float32)
    h1 = _leaky_relu(h1 + b1_ref[...])

    # Conv2d(ndf, 2*ndf, 1)  (pre-BN)
    w2 = w2_ref[...]
    z2 = jnp.dot(w2, h1.astype(w2.dtype), preferred_element_type=jnp.float32)
    z2 = z2 + b2_ref[...]

    sum_ref[...] += jnp.sum(z2, axis=1, keepdims=True)
    sumsq_ref[...] += jnp.sum(z2 * z2, axis=1, keepdims=True)

    if n_pad > 0:
        # Only the last pixel tile of each batch element carries zero-padded
        # columns; subtract their (kernel-computed, hence exact) contribution.
        @pl.when(t == pl.num_programs(1) - 1)
        def _():
            lane = lax.broadcasted_iota(jnp.int32, z2.shape, 1)
            pad = (lane >= (tm - n_pad)).astype(jnp.float32)
            zp = z2 * pad
            sum_ref[...] -= jnp.sum(zp, axis=1, keepdims=True)
            sumsq_ref[...] -= jnp.sum(zp * zp, axis=1, keepdims=True)


# ---------------------------------------------------------------------------
# Pass 2: recompute h1/z2, apply folded BN scale/shift + LeakyReLU + final conv
# ---------------------------------------------------------------------------
def _apply_kernel(x_ref, w1_ref, b1_ref, w2_ref, b2_ref,
                  scale_ref, shift_ref, w3_ref, b3_ref, o_ref):
    x = x_ref[...]                         # (C, TM)
    w1 = w1_ref[...]
    h1 = jnp.dot(w1, x.astype(w1.dtype), preferred_element_type=jnp.float32)
    h1 = _leaky_relu(h1 + b1_ref[...])

    w2 = w2_ref[...]
    z2 = jnp.dot(w2, h1.astype(w2.dtype), preferred_element_type=jnp.float32)
    z2 = z2 + b2_ref[...]

    # Folded BatchNorm: scale = gamma*rsqrt(var+eps), shift = beta - mean*scale
    h2 = _leaky_relu(z2 * scale_ref[...] + shift_ref[...])

    # Conv2d(2*ndf, 1, 1) -> lane-dense (1, TM) output.
    # NOTE: an M=1 matmul wastes an MXU stream; if a bundle dump shows the MXU
    # slot saturated here, replace with a VPU multiply + XLU sublane reduce:
    #   out = jnp.sum(h2 * w3_col, axis=0, keepdims=True)
    w3 = w3_ref[...]
    out = jnp.dot(w3, h2.astype(w3.dtype), preferred_element_type=jnp.float32)
    o_ref[...] = (out + b3_ref[...]).astype(o_ref.dtype)


# ---------------------------------------------------------------------------
# Wrapper
# ---------------------------------------------------------------------------
def pixel_discriminator_forward(x_nchw, params, *, use_bf16_matmul=None):
    """x_nchw: (N, C_in, H, W) float32. Returns (N, 1, H, W) float32."""
    w1, b1, w2, b2, gamma, beta, w3, b3 = params
    N, C, H, W = x_nchw.shape
    HW = H * W
    ndf = w1.shape[0]
    ndf2 = 2 * ndf

    cfg = _default_config()
    if use_bf16_matmul is None:
        use_bf16_matmul = cfg["bf16"]
    vmem_limit = cfg["vmem_limit"]

    # channels-major pixel layout (pixels on lanes); no transpose needed
    x = x_nchw.reshape(N, C, HW)

    tm = min(cfg["tm"], _round_up(HW, 128))
    hw_pad = _round_up(HW, tm)
    n_pad = hw_pad - HW
    if n_pad:
        x = jnp.pad(x, ((0, 0), (0, 0), (0, n_pad)))
    num_tiles = hw_pad // tm

    # bf16 matmul inputs on bf16-native MXUs; accumulation & epilogue stay f32.
    if use_bf16_matmul:
        w1_k = w1.astype(jnp.bfloat16)
        w2_k = w2.astype(jnp.bfloat16)
        w3_k = w3.astype(jnp.bfloat16)
    else:
        w1_k, w2_k, w3_k = w1, w2, w3

    x_spec = pl.BlockSpec((None, C, tm), lambda n, t: (n, 0, t))
    const = lambda shape: pl.BlockSpec(shape, lambda n, t: (0,) * len(shape))
    stats_spec = pl.BlockSpec((None, ndf2, 1), lambda n, t: (n, 0, 0))

    # ---- pass 1: per-n partial BN statistics (parallel over N on v7x) ------
    sums, sumsqs = pl.pallas_call(
        functools.partial(_stats_kernel, n_pad=n_pad, tm=tm),
        out_shape=(jax.ShapeDtypeStruct((N, ndf2, 1), jnp.float32),
                   jax.ShapeDtypeStruct((N, ndf2, 1), jnp.float32)),
        grid=(N, num_tiles),
        in_specs=[
            x_spec,
            const((ndf, C)), const((ndf, 1)),
            const((ndf2, ndf)), const((ndf2, 1)),
        ],
        out_specs=(stats_spec, stats_spec),
        compiler_params=pltpu.CompilerParams(
            dimension_semantics=("parallel", "arbitrary"),
            vmem_limit_bytes=vmem_limit),
    )(x, w1_k, b1, w2_k, b2)

    cnt = jnp.float32(N * HW)
    mean = jnp.sum(sums, axis=0) / cnt                              # (ndf2, 1)
    var = jnp.maximum(jnp.sum(sumsqs, axis=0) / cnt - mean * mean, 0.0)
    inv_std = lax.rsqrt(var + BN_EPS)
    scale = gamma * inv_std                                         # (ndf2, 1)
    shift = beta - mean * scale                                     # (ndf2, 1)

    # ---- pass 2: normalize + LeakyReLU + final 1x1 conv ---------------------
    out_padded = pl.pallas_call(
        _apply_kernel,
        out_shape=jax.ShapeDtypeStruct((N, 1, hw_pad), jnp.float32),
        grid=(N, num_tiles),
        in_specs=[
            x_spec,
            const((ndf, C)), const((ndf, 1)),
            const((ndf2, ndf)), const((ndf2, 1)),
            const((ndf2, 1)), const((ndf2, 1)),
            const((1, ndf2)), const((1, 1)),
        ],
        out_specs=pl.BlockSpec((None, 1, tm), lambda n, t: (n, 0, t)),
        compiler_params=pltpu.CompilerParams(
            dimension_semantics=("parallel", "parallel"),
            vmem_limit_bytes=vmem_limit),
    )(x, w1_k, b1, w2_k, b2, scale, shift, w3_k, b3)

    return out_padded[:, :, :HW].reshape(N, 1, H, W)


# ---------------------------------------------------------------------------
# Params / reference / test
# ---------------------------------------------------------------------------
def init_params(key, input_nc, ndf=64):
    """Deterministic synthetic params. Conv weights stored channels-major
    (C_out, C_in); biases and BN affine as (C_out, 1)."""
    k1, k2, k3, k4, k5, k6 = jax.random.split(key, 6)

    def conv_init(kw, kb, c_in, c_out):
        bound = 1.0 / jnp.sqrt(jnp.float32(c_in))
        w = jax.random.uniform(kw, (c_out, c_in), jnp.float32, -bound, bound)
        b = jax.random.uniform(kb, (c_out, 1), jnp.float32, -bound, bound)
        return w, b

    w1, b1 = conv_init(k1, k2, input_nc, ndf)
    w2, b2 = conv_init(k3, k4, ndf, 2 * ndf)
    w3, b3 = conv_init(k5, k6, 2 * ndf, 1)
    gamma = jnp.ones((2 * ndf, 1), jnp.float32)   # BatchNorm2d weight default
    beta = jnp.zeros((2 * ndf, 1), jnp.float32)   # BatchNorm2d bias default
    return (w1, b1, w2, b2, gamma, beta, w3, b3)


def _reference(x_nchw, params, use_bf16_matmul=False):
    """Pure-JAX reference (training-mode BN). Optionally mimics bf16 dot inputs
    (f32 accumulation) to check the bf16 kernel path tightly."""
    w1, b1, w2, b2, gamma, beta, w3, b3 = params
    N, C, H, W = x_nchw.shape
    cd = jnp.bfloat16 if use_bf16_matmul else jnp.float32
    x = x_nchw.reshape(N, C, H * W)
    h1 = jnp.einsum('oc,ncm->nom', w1.astype(cd), x.astype(cd),
                    preferred_element_type=jnp.float32) + b1[None]
    h1 = jnp.where(h1 > 0, h1, LEAKY_SLOPE * h1)
    z2 = jnp.einsum('oc,ncm->nom', w2.astype(cd), h1.astype(cd),
                    preferred_element_type=jnp.float32) + b2[None]
    mean = z2.mean(axis=(0, 2), keepdims=True)
    var = ((z2 - mean) ** 2).mean(axis=(0, 2), keepdims=True)
    z2n = (z2 - mean) * lax.rsqrt(var + BN_EPS) * gamma[None] + beta[None]
    h2 = jnp.where(z2n > 0, z2n, LEAKY_SLOPE * z2n)
    out = jnp.einsum('oc,ncm->nom', w3.astype(cd), h2.astype(cd),
                     preferred_element_type=jnp.float32) + b3[None]
    return out.reshape(N, 1, H, W)


if __name__ == "__main__":
    key = jax.random.PRNGKey(0)
    kx, kp, kx2 = jax.random.split(key, 3)

    N, C_in, H, W = 2, 4, 16, 16
    ndf = 64
    params = init_params(kp, C_in, ndf)

    # case 1: H*W multiple of the lane tile; case 2: ragged (exercises padding)
    x = jax.random.normal(kx, (N, C_in, H, W), jnp.float32)
    x2 = jax.random.normal(kx2, (N, C_in, 10, 10), jnp.float32)

    # --- f32-matmul path: tight check against the pure-JAX reference ---------
    for xi, shape in ((x, (N, 1, H, W)), (x2, (N, 1, 10, 10))):
        out = jax.block_until_ready(
            pixel_discriminator_forward(xi, params, use_bf16_matmul=False))
        ref = _reference(xi, params, use_bf16_matmul=False)
        assert out.shape == shape
        assert jnp.allclose(out, ref, atol=1e-4, rtol=1e-4), "f32 mismatch vs reference"

    # --- auto path (bf16 dot inputs on v6e/v7x): bf16-aware reference --------
    auto_bf16 = _default_config()["bf16"]
    tol = 1e-2 if auto_bf16 else 1e-4
    for xi in (x, x2):
        out = jax.block_until_ready(pixel_discriminator_forward(xi, params))
        ref = _reference(xi, params, use_bf16_matmul=auto_bf16)
        assert jnp.allclose(out, ref, atol=tol, rtol=tol), "auto-mode mismatch vs reference"

    print("KERNEL_OK")
</pallas_src>

<mosaic_0001>
module attributes {stable_mosaic.version = 11 : i64} {
  func.func @_stats_kernel(%arg0: i32, %arg1: i32, %arg2: memref<1x4x256xf32, #tpu.memory_space<vmem>>, %arg3: memref<64x4xf32, #tpu.memory_space<vmem>>, %arg4: memref<64x1xf32, #tpu.memory_space<vmem>>, %arg5: memref<128x64xf32, #tpu.memory_space<vmem>>, %arg6: memref<128x1xf32, #tpu.memory_space<vmem>>, %arg7: memref<1x128x1xf32, #tpu.memory_space<vmem>>, %arg8: memref<1x128x1xf32, #tpu.memory_space<vmem>>) attributes {dimension_semantics = [#tpu.dimension_semantics<parallel>, #tpu.dimension_semantics<arbitrary>], iteration_bounds = array<i64: 2, 1>, scalar_prefetch = 0 : i64, scratch_operands = 0 : i64, tpu.core_type = #tpu.core_type<tc>, window_params = [{transform_indices = @transform_0, window_bounds = array<i64: 1, 4, 256>}, {pipeline_mode = #tpu.pipeline_mode<synchronous>, transform_indices = @transform_1, window_bounds = array<i64: 64, 4>}, {pipeline_mode = #tpu.pipeline_mode<synchronous>, transform_indices = @transform_2, window_bounds = array<i64: 64, 1>}, {pipeline_mode = #tpu.pipeline_mode<synchronous>, transform_indices = @transform_3, window_bounds = array<i64: 128, 64>}, {pipeline_mode = #tpu.pipeline_mode<synchronous>, transform_indices = @transform_4, window_bounds = array<i64: 128, 1>}, {transform_indices = @transform_5, window_bounds = array<i64: 1, 128, 1>}, {transform_indices = @transform_6, window_bounds = array<i64: 1, 128, 1>}]} {
    %c0_i32 = arith.constant 0 : i32
    %0 = arith.cmpi eq, %arg1, %c0_i32 : i32
    %1 = arith.extui %0 : i1 to i32
    %c0_i32_0 = arith.constant 0 : i32
    %2 = arith.cmpi ne, %1, %c0_i32_0 : i32
    scf.if %2 {
      %cst_28 = arith.constant 0.000000e+00 : f32
      %37 = vector.broadcast %cst_28 : f32 to vector<128x1xf32>
      %c0_29 = arith.constant 0 : index
      %c0_30 = arith.constant 0 : index
      %c0_31 = arith.constant 0 : index
      %38 = vector.load %arg7[%c0_29, %c0_30, %c0_31] : memref<1x128x1xf32, #tpu.memory_space<vmem>>, vector<1x128x1xf32>
      %39 = vector.shape_cast %38 : vector<1x128x1xf32> to vector<128x1xf32>
      %40 = vector.shape_cast %37 : vector<128x1xf32> to vector<1x128x1xf32>
      tpu.vector_store %arg7[%c0_29, %c0_30, %c0_31], %40 {strides = array<i32>} : memref<1x128x1xf32, #tpu.memory_space<vmem>>, vector<1x128x1xf32>,
      %cst_32 = arith.constant 0.000000e+00 : f32
      %41 = vector.broadcast %cst_32 : f32 to vector<128x1xf32>
      %c0_33 = arith.constant 0 : index
      %c0_34 = arith.constant 0 : index
      %c0_35 = arith.constant 0 : index
      %42 = vector.load %arg8[%c0_33, %c0_34, %c0_35] : memref<1x128x1xf32, #tpu.memory_space<vmem>>, vector<1x128x1xf32>
      %43 = vector.shape_cast %42 : vector<1x128x1xf32> to vector<128x1xf32>
      %44 = vector.shape_cast %41 : vector<128x1xf32> to vector<1x128x1xf32>
      tpu.vector_store %arg8[%c0_33, %c0_34, %c0_35], %44 {strides = array<i32>} : memref<1x128x1xf32, #tpu.memory_space<vmem>>, vector<1x128x1xf32>,
    } else {
    }
    %c0 = arith.constant 0 : index
    %c0_1 = arith.constant 0 : index
    %c0_2 = arith.constant 0 : index
    %3 = vector.load %arg2[%c0, %c0_1, %c0_2] : memref<1x4x256xf32, #tpu.memory_space<vmem>>, vector<1x4x256xf32>
    %4 = vector.shape_cast %3 : vector<1x4x256xf32> to vector<4x256xf32>
    %c0_3 = arith.constant 0 : index
    %c0_4 = arith.constant 0 : index
    %5 = vector.load %arg3[%c0_3, %c0_4] : memref<64x4xf32, #tpu.memory_space<vmem>>, vector<64x4xf32>
    %cst = arith.constant dense<0.000000e+00> : vector<64x256xf32>
    %6 = tpu.matmul %5, %4, %cst {dimension_numbers = #tpu.dot_dimension_numbers<[1], [0], [0], [1], [0, 0, 1, 1], [], []>} : vector<64x4xf32>, vector<4x256xf32>, vector<64x256xf32> -> vector<64x256xf32>
    %c0_5 = arith.constant 0 : index
    %c0_6 = arith.constant 0 : index
    %7 = vector.load %arg4[%c0_5, %c0_6] : memref<64x1xf32, #tpu.memory_space<vmem>>, vector<64x1xf32>
    %8 = vector.broadcast %7 : vector<64x1xf32> to vector<64x256xf32>
    %9 = arith.addf %6, %8 : vector<64x256xf32>
    %cst_7 = arith.constant 0.000000e+00 : f32
    %10 = vector.broadcast %cst_7 : f32 to vector<64x256xf32>
    %11 = arith.cmpf ogt, %9, %10 : vector<64x256xf32>
    %cst_8 = arith.constant 2.000000e-01 : f32
    %12 = vector.broadcast %cst_8 : f32 to vector<64x256xf32>
    %13 = arith.mulf %12, %9 : vector<64x256xf32>
    %14 = arith.select %11, %9, %13 : vector<64x256xi1>, vector<64x256xf32>
    %c0_9 = arith.constant 0 : index
    %c0_10 = arith.constant 0 : index
    %15 = vector.load %arg5[%c0_9, %c0_10] : memref<128x64xf32, #tpu.memory_space<vmem>>, vector<128x64xf32>
    %cst_11 = arith.constant dense<0.000000e+00> : vector<128x256xf32>
    %16 = tpu.matmul %15, %14, %cst_11 {dimension_numbers = #tpu.dot_dimension_numbers<[1], [0], [0], [1], [0, 0, 1, 1], [], []>} : vector<128x64xf32>, vector<64x256xf32>, vector<128x256xf32> -> vector<128x256xf32>
    %c0_12 = arith.constant 0 : index
    %c0_13 = arith.constant 0 : index
    %17 = vector.load %arg6[%c0_12, %c0_13] : memref<128x1xf32, #tpu.memory_space<vmem>>, vector<128x1xf32>
    %18 = vector.broadcast %17 : vector<128x1xf32> to vector<128x256xf32>
    %19 = arith.addf %16, %18 : vector<128x256xf32>
    %c0_14 = arith.constant 0 : index
    %c0_15 = arith.constant 0 : index
    %c0_16 = arith.constant 0 : index
    %20 = vector.load %arg7[%c0_14, %c0_15, %c0_16] : memref<1x128x1xf32, #tpu.memory_space<vmem>>, vector<1x128x1xf32>
    %21 = vector.shape_cast %20 : vector<1x128x1xf32> to vector<128x1xf32>
    %cst_17 = arith.constant dense<0.000000e+00> : vector<128xf32>
    %22 = vector.multi_reduction <add>, %19, %cst_17 [1] : vector<128x256xf32> to vector<128xf32>
    %23 = vector.shape_cast %22 : vector<128xf32> to vector<128x1xf32>
    %24 = arith.addf %21, %23 : vector<128x1xf32>
    %c0_18 = arith.constant 0 : index
    %c0_19 = arith.constant 0 : index
    %c0_20 = arith.constant 0 : index
    %25 = vector.load %arg7[%c0_18, %c0_19, %c0_20] : memref<1x128x1xf32, #tpu.memory_space<vmem>>, vector<1x128x1xf32>
    %26 = vector.shape_cast %25 : vector<1x128x1xf32> to vector<128x1xf32>
    %27 = vector.shape_cast %24 : vector<128x1xf32> to vector<1x128x1xf32>
    tpu.vector_store %arg7[%c0_18, %c0_19, %c0_20], %27 {strides = array<i32>} : memref<1x128x1xf32, #tpu.memory_space<vmem>>, vector<1x128x1xf32>,
    %c0_21 = arith.constant 0 : index
    %c0_22 = arith.constant 0 : index
    %c0_23 = arith.constant 0 : index
    %28 = vector.load %arg8[%c0_21, %c0_22, %c0_23] : memref<1x128x1xf32, #tpu.memory_space<vmem>>, vector<1x128x1xf32>
    %29 = vector.shape_cast %28 : vector<1x128x1xf32> to vector<128x1xf32>
    %30 = arith.mulf %19, %19 : vector<128x256xf32>
    %cst_24 = arith.constant dense<0.000000e+00> : vector<128xf32>
    %31 = vector.multi_reduction <add>, %30, %cst_24 [1] : vector<128x256xf32> to vector<128xf32>
    %32 = vector.shape_cast %31 : vector<128xf32> to vector<128x1xf32>
    %33 = arith.addf %29, %32 : vector<128x1xf32>
    %c0_25 = arith.constant 0 : index
    %c0_26 = arith.constant 0 : index
    %c0_27 = arith.constant 0 : index
    %34 = vector.load %arg8[%c0_25, %c0_26, %c0_27] : memref<1x128x1xf32, #tpu.memory_space<vmem>>, vector<1x128x1xf32>
    %35 = vector.shape_cast %34 : vector<1x128x1xf32> to vector<128x1xf32>
    %36 = vector.shape_cast %33 : vector<128x1xf32> to vector<1x128x1xf32>
    tpu.vector_store %arg8[%c0_25, %c0_26, %c0_27], %36 {strides = array<i32>} : memref<1x128x1xf32, #tpu.memory_space<vmem>>, vector<1x128x1xf32>,
    return
  }
  func.func @transform_0(%arg0: i32, %arg1: i32) -> (i32, i32, i32) {
    %c0_i32 = arith.constant 0 : i32
    %c0_i32_0 = arith.constant 0 : i32
    return %arg0, %c0_i32, %arg1 : i32, i32, i32
  }
  func.func @transform_1(%arg0: i32, %arg1: i32) -> (i32, i32) {
    %c0_i32 = arith.constant 0 : i32
    %c0_i32_0 = arith.constant 0 : i32
    %c0_i32_1 = arith.constant 0 : i32
    return %c0_i32, %c0_i32_0 : i32, i32
  }
  func.func @transform_2(%arg0: i32, %arg1: i32) -> (i32, i32) {
    %c0_i32 = arith.constant 0 : i32
    %c0_i32_0 = arith.constant 0 : i32
    %c0_i32_1 = arith.constant 0 : i32
    return %c0_i32, %c0_i32_0 : i32, i32
  }
  func.func @transform_3(%arg0: i32, %arg1: i32) -> (i32, i32) {
    %c0_i32 = arith.constant 0 : i32
    %c0_i32_0 = arith.constant 0 : i32
    %c0_i32_1 = arith.constant 0 : i32
    return %c0_i32, %c0_i32_0 : i32, i32
  }
  func.func @transform_4(%arg0: i32, %arg1: i32) -> (i32, i32) {
    %c0_i32 = arith.constant 0 : i32
    %c0_i32_0 = arith.constant 0 : i32
    %c0_i32_1 = arith.constant 0 : i32
    return %c0_i32, %c0_i32_0 : i32, i32
  }
  func.func @transform_5(%arg0: i32, %arg1: i32) -> (i32, i32, i32) {
    %c0_i32 = arith.constant 0 : i32
    %c0_i32_0 = arith.constant 0 : i32
    %c0_i32_1 = arith.constant 0 : i32
    return %arg0, %c0_i32, %c0_i32_0 : i32, i32, i32
  }
  func.func @transform_6(%arg0: i32, %arg1: i32) -> (i32, i32, i32) {
    %c0_i32 = arith.constant 0 : i32
    %c0_i32_0 = arith.constant 0 : i32
    %c0_i32_1 = arith.constant 0 : i32
    return %arg0, %c0_i32, %c0_i32_0 : i32, i32, i32
  }
}

</mosaic_0001>

<llo_original>
// kernel: tpu_custom_call.1
$region0: #{tpu_custom_call.1}
  #allocation0 [shape = 'u32[]', space=smem, size = 0x4, offset = 0x4, fixed_abs, tag = 'smem constant byte address 0x4 - core index']
  #allocation1 [shape = 'u32[144,128]{1,0:T(1,128)}', space=vmem, size = 0x12000, scoped, tag = 'internal scratch']
  %s0 = inlined_call_operand.vmem [shape: f32[2,4,256], index: 0, kind: input, shape index: {}]
  %s1 = inlined_call_operand.vmem [shape: f32[64,4], index: 1, kind: input, shape index: {}]
  %s2 = inlined_call_operand.vmem [shape: f32[64,1], index: 2, kind: input, shape index: {}]
  %s3 = inlined_call_operand.vmem [shape: f32[128,64], index: 3, kind: input, shape index: {}]
  %s4 = inlined_call_operand.vmem [shape: f32[128,1], index: 4, kind: input, shape index: {}]
  %s5 = inlined_call_operand.vmem [shape: f32[2,128,1], index: 5, kind: output, shape index: {0}]
  %s6 = inlined_call_operand.vmem [shape: f32[2,128,1], index: 6, kind: output, shape index: {1}]
  %7 = xla_tuple %s5, %s6
  %s8 = sld [smem:[#allocation0]]
  $region65: #{tpu_custom_call.1} parent=0
    _
  %s10 = ssub.s32 1, %s8
  %s11 = scalar_select 0, %s10, %s8
  loop: start=0, step=1, limit=4
  $region2: #{tpu_custom_call.1} parent=0 // loop_pre_header
    _
  $region3: #{tpu_custom_call.1} parent=0 // loop_header
    %s13 = sphi 0, %s17
    %p14 = scmp.ge.s32.totalorder %s13, 4
    %s20 = sphi 0, %s32
    %s21 = sphi 0, %s28
    %s22 = sphi 0, %s20
    %s23 = sphi 0, %s21
    %s24 = sphi 0, %s22
    %s25 = sphi 0, %s23
    %s37 = sphi 0, %s39
    %s40 = sphi 0, %s37
    %s41 = sphi 0, %s40
    %s57 = sphi 0, %s41
    %s61 = sphi 0, %s61
    %s63 = sphi 0, %s61
    %s64 = sphi 0, %s63
    %s78 = sphi 0, %s64
    %s82 = sphi 0, %s82
    %s84 = sphi 0, %s82
    %s85 = sphi 0, %s84
    %s99 = sphi 0, %s85
    %s103 = sphi 0, %s103
    %s105 = sphi 0, %s103
    %s106 = sphi 0, %s105
    %s120 = sphi 0, %s106
    %s124 = sphi 0, %s124
    %s126 = sphi 0, %s124
    %s127 = sphi 0, %s126
    %s141 = sphi 0, %s127
    %s147 = sphi 0, %s149
    %s150 = sphi 0, %s147
    %s151 = sphi 0, %s150
    %s167 = sphi 0, %s151
    %s173 = sphi 0, %s175
    %s176 = sphi 0, %s173
    %s177 = sphi 0, %s176
    %s193 = sphi 0, %s177
  $region4: #{tpu_custom_call.1} parent=0 // loop_header_branch
    %16 = sbr.rel (%p14) target = $region8
  $region5: #{tpu_custom_call.1} parent=0 // loop_body
    %s18 = ssub.s32 %s13, 1
    %s19 = ssub.s32 %s13, 2
    %s26 = sadd.s32 1, %s21
    %p27 = scmp.ge.s32.totalorder %s26, 1
    %s28 = scalar_select %p27, 0, %s26
    %s29 = sadd.s32 1, %s20
    %s30 = scalar_select %p27, %s29, %s20
    %p31 = scmp.ge.s32.totalorder %s30, 2
    %s32 = scalar_select %p31, 0, %s30
    %s33 = ssub.s32 %s20, %s32
    %s34 = ssub.s32 %s21, %s28
    %s35 = sor.u32 %s33, %s34
    %p36 = scmp.eq.s32.totalorder %s35, 0
    %s38 = sadd.s32 %s37, 1
    %s39 = scalar_select %p36, %s37, %s38
    %p42 = pneg %p36
    %p43 = scmp.eq.s32.totalorder %s13, 1
    %p44 = por %p42, %p43
    %p45 = scmp.ne.s32.totalorder %s37, %s40
    %p46 = scmp.eq.s32.totalorder %s13, 0
    %p47 = por %p45, %p46
    %p48 = scmp.ne.s32.totalorder %s37, %s40
    %p49 = scmp.eq.s32.totalorder %s18, 1
    %p50 = por %p48, %p49
    %p51 = scmp.ne.s32.totalorder %s40, %s41
    %p52 = scmp.eq.s32.totalorder %s18, 0
    %p53 = por %p51, %p52
    %p54 = scmp.ne.s32.totalorder %s40, %s41
    %p55 = scmp.eq.s32.totalorder %s19, 1
    %p56 = por %p54, %p55
    %p58 = scmp.ne.s32.totalorder %s41, %s57
    %p59 = scmp.eq.s32.totalorder %s19, 0
    %p60 = por %p58, %p59
    %s62 = sadd.s32 %s61, 1
    %p65 = scmp.eq.s32.totalorder %s13, 1
    %p66 = scmp.ne.s32.totalorder %s61, %s63
    %p67 = scmp.eq.s32.totalorder %s13, 0
    %p68 = por %p66, %p67
    %p69 = scmp.ne.s32.totalorder %s61, %s63
    %p70 = scmp.eq.s32.totalorder %s18, 1
    %p71 = por %p69, %p70
    %p72 = scmp.ne.s32.totalorder %s63, %s64
    %p73 = scmp.eq.s32.totalorder %s18, 0
    %p74 = por %p72, %p73
    %p75 = scmp.ne.s32.totalorder %s63, %s64
    %p76 = scmp.eq.s32.totalorder %s19, 1
    %p77 = por %p75, %p76
    %p79 = scmp.ne.s32.totalorder %s64, %s78
    %p80 = scmp.eq.s32.totalorder %s19, 0
    %p81 = por %p79, %p80
    %s83 = sadd.s32 %s82, 1
    %p86 = scmp.eq.s32.totalorder %s13, 1
    %p87 = scmp.ne.s32.totalorder %s82, %s84
    %p88 = scmp.eq.s32.totalorder %s13, 0
    %p89 = por %p87, %p88
    %p90 = scmp.ne.s32.totalorder %s82, %s84
    %p91 = scmp.eq.s32.totalorder %s18, 1
    %p92 = por %p90, %p91
    %p93 = scmp.ne.s32.totalorder %s84, %s85
    %p94 = scmp.eq.s32.totalorder %s18, 0
    %p95 = por %p93, %p94
    %p96 = scmp.ne.s32.totalorder %s84, %s85
    %p97 = scmp.eq.s32.totalorder %s19, 1
    %p98 = por %p96, %p97
    %p100 = scmp.ne.s32.totalorder %s85, %s99
    %p101 = scmp.eq.s32.totalorder %s19, 0
    %p102 = por %p100, %p101
    %s104 = sadd.s32 %s103, 1
    %p107 = scmp.eq.s32.totalorder %s13, 1
    %p108 = scmp.ne.s32.totalorder %s103, %s105
    %p109 = scmp.eq.s32.totalorder %s13, 0
    %p110 = por %p108, %p109
    %p111 = scmp.ne.s32.totalorder %s103, %s105
    %p112 = scmp.eq.s32.totalorder %s18, 1
    %p113 = por %p111, %p112
    %p114 = scmp.ne.s32.totalorder %s105, %s106
    %p115 = scmp.eq.s32.totalorder %s18, 0
    %p116 = por %p114, %p115
    %p117 = scmp.ne.s32.totalorder %s105, %s106
    %p118 = scmp.eq.s32.totalorder %s19, 1
    %p119 = por %p117, %p118
    %p121 = scmp.ne.s32.totalorder %s106, %s120
    %p122 = scmp.eq.s32.totalorder %s19, 0
    %p123 = por %p121, %p122
    %s125 = sadd.s32 %s124, 1
    %p128 = scmp.eq.s32.totalorder %s13, 1
    %p129 = scmp.ne.s32.totalorder %s124, %s126
    %p130 = scmp.eq.s32.totalorder %s13, 0
    %p131 = por %p129, %p130
    %p132 = scmp.ne.s32.totalorder %s124, %s126
    %p133 = scmp.eq.s32.totalorder %s18, 1
    %p134 = por %p132, %p133
    %p135 = scmp.ne.s32.totalorder %s126, %s127
    %p136 = scmp.eq.s32.totalorder %s18, 0
    %p137 = por %p135, %p136
    %p138 = scmp.ne.s32.totalorder %s126, %s127
    %p139 = scmp.eq.s32.totalorder %s19, 1
    %p140 = por %p138, %p139
    %p142 = scmp.ne.s32.totalorder %s127, %s141
    %p143 = scmp.eq.s32.totalorder %s19, 0
    %p144 = por %p142, %p143
    %s145 = ssub.s32 %s20, %s32
    %p146 = scmp.eq.s32.totalorder %s145, 0
    %s148 = sadd.s32 %s147, 1
    %s149 = scalar_select %p146, %s147, %s148
    %p152 = pneg %p146
    %p153 = scmp.eq.s32.totalorder %s13, 1
    %p154 = por %p152, %p153
    %p155 = scmp.ne.s32.totalorder %s147, %s150
    %p156 = scmp.eq.s32.totalorder %s13, 0
    %p157 = por %p155, %p156
    %p158 = scmp.ne.s32.totalorder %s147, %s150
    %p159 = scmp.eq.s32.totalorder %s18, 1
    %p160 = por %p158, %p159
    %p161 = scmp.ne.s32.totalorder %s150, %s151
    %p162 = scmp.eq.s32.totalorder %s18, 0
    %p163 = por %p161, %p162
    %p164 = scmp.ne.s32.totalorder %s150, %s151
    %p165 = scmp.eq.s32.totalorder %s19, 1
    %p166 = por %p164, %p165
    %p168 = scmp.ne.s32.totalorder %s151, %s167
    %p169 = scmp.eq.s32.totalorder %s19, 0
    %p170 = por %p168, %p169
    %s171 = ssub.s32 %s20, %s32
    %p172 = scmp.eq.s32.totalorder %s171, 0
    %s174 = sadd.s32 %s173, 1
    %s175 = scalar_select %p172, %s173, %s174
    %p178 = pneg %p172
    %p179 = scmp.eq.s32.totalorder %s13, 1
    %p180 = por %p178, %p179
    %p181 = scmp.ne.s32.totalorder %s173, %s176
    %p182 = scmp.eq.s32.totalorder %s13, 0
    %p183 = por %p181, %p182
    %p184 = scmp.ne.s32.totalorder %s173, %s176
    %p185 = scmp.eq.s32.totalorder %s18, 1
    %p186 = por %p184, %p185
    %p187 = scmp.ne.s32.totalorder %s176, %s177
    %p188 = scmp.eq.s32.totalorder %s18, 0
    %p189 = por %p187, %p188
    %p190 = scmp.ne.s32.totalorder %s176, %s177
    %p191 = scmp.eq.s32.totalorder %s19, 1
    %p192 = por %p190, %p191
    %p194 = scmp.ne.s32.totalorder %s177, %s193
    %p195 = scmp.eq.s32.totalorder %s19, 0
    %p196 = por %p194, %p195
    %p197 = scmp.le.s32.totalorder 1, %s13
    %p198 = scmp.lt.s32.totalorder %s13, 3
    %p199 = pnand %p197, %p198
    %p200 = pneg %p199
    // Predicated region
    $region9: #{tpu_custom_call.1} parent=5 // pred_check
      _
    $region10: #{tpu_custom_call.1} parent=5 // pred_check_branch
      %202 = sbr.rel (%p199) target = $region12
    $region11: #{tpu_custom_call.1} parent=5 // pred_region
      %s203 = ssub.s32 %s13, 1
      // Predicated region
      $region13: #{tpu_custom_call.1} parent=11 // pred_check
        %p204 = pneg %p74
      $region14: #{tpu_custom_call.1} parent=11 // pred_check_branch
        %206 = sbr.rel (%p204) target = $region16
      $region15: #{tpu_custom_call.1} parent=11 // pred_region
        _
      $region16: #{tpu_custom_call.1} parent=11 // pred_fallthru
        _
      // Predicated region
      $region17: #{tpu_custom_call.1} parent=11 // pred_check
        %p207 = pneg %p95
      $region18: #{tpu_custom_call.1} parent=11 // pred_check_branch
        %209 = sbr.rel (%p207) target = $region20
      $region19: #{tpu_custom_call.1} parent=11 // pred_region
        _
      $region20: #{tpu_custom_call.1} parent=11 // pred_fallthru
        _
      // Predicated region
      $region21: #{tpu_custom_call.1} parent=11 // pred_check
        %p210 = pneg %p116
      $region22: #{tpu_custom_call.1} parent=11 // pred_check_branch
        %212 = sbr.rel (%p210) target = $region24
      $region23: #{tpu_custom_call.1} parent=11 // pred_region
        _
      $region24: #{tpu_custom_call.1} parent=11 // pred_fallthru
        _
      // Predicated region
      $region25: #{tpu_custom_call.1} parent=11 // pred_check
        %p213 = pneg %p137
      $region26: #{tpu_custom_call.1} parent=11 // pred_check_branch
        %215 = sbr.rel (%p213) target = $region28
      $region27: #{tpu_custom_call.1} parent=11 // pred_region
        _
      $region28: #{tpu_custom_call.1} parent=11 // pred_fallthru
        _
    $region12: #{tpu_custom_call.1} parent=5 // pred_fallthru
      _
    %p216 = scmp.lt.s32.totalorder %s13, 2
    // Predicated region
    $region29: #{tpu_custom_call.1} parent=5 // pred_check
      %p217 = pneg %p216
    $region30: #{tpu_custom_call.1} parent=5 // pred_check_branch
      %219 = sbr.rel (%p217) target = $region32
    $region31: #{tpu_custom_call.1} parent=5 // pred_region
      // Predicated region
      $region33: #{tpu_custom_call.1} parent=31 // pred_check
        %p220 = pneg %p47
      $region34: #{tpu_custom_call.1} parent=31 // pred_check_branch
        %222 = sbr.rel (%p220) target = $region36
      $region35: #{tpu_custom_call.1} parent=31 // pred_region
        %s223 = smul.u32 2, %s21
        %p224 = scmp.lt.s32.totalorder %s20, 1
        %s225 = scalar_select %p224, %s20, 1
        %p226 = scmp.lt.s32.totalorder %s223, 1
        %s227 = scalar_select %p226, %s223, 1
        %s228 = smul.addr %s225, 2
        %s229 = sadd.s32 %s227, %s228
        %s230 = smul.addr %s229, 4
        %s231 = scalar_lea.vmem %s0, %s230
        %s232 = smul.u32 2, %s21
      $region36: #{tpu_custom_call.1} parent=31 // pred_fallthru
        _
    $region32: #{tpu_custom_call.1} parent=5 // pred_fallthru
      _
    %p233 = scmp.le.s32.totalorder 1, %s13
    %p234 = scmp.lt.s32.totalorder %s13, 3
    %p235 = pnand %p233, %p234
    %p236 = pneg %p235
    // Predicated region
    $region37: #{tpu_custom_call.1} parent=5 // pred_check
      _
    $region38: #{tpu_custom_call.1} parent=5 // pred_check_branch
      %238 = sbr.rel (%p235) target = $region40
    $region39: #{tpu_custom_call.1} parent=5 // pred_region
      %s239 = ssub.s32 %s13, 1
      %s240 = smul.u32 2, %s23
      %p241 = scmp.lt.s32.totalorder %s22, 1
      %s242 = scalar_select %p241, %s22, 1
      %p243 = scmp.lt.s32.totalorder %s240, 1
      %s244 = scalar_select %p243, %s240, 1
      %s245 = smul.addr %s242, 2
      %s246 = sadd.s32 %s244, %s245
      %s247 = smul.addr %s246, 4
      %s248 = scalar_lea.vmem %s0, %s247
      %p249 = pneg %p53
      %p250 = pneg %p50
      %p251 = pneg %p74
      %p252 = pneg %p71
      %p253 = pneg %p95
      %p254 = pneg %p92
      %p255 = pneg %p116
      %p256 = pneg %p113
      %p257 = pneg %p137
      %p258 = pneg %p134
      %p259 = pneg %p163
      %p260 = pneg %p160
      %p261 = scmp.lt.s32.totalorder %s22, 1
      %s262 = scalar_select %p261, %s22, 1
      %s263 = smul.addr %s262, 16
      %s264 = smul.addr %s263, 8
      %s265 = scalar_lea.vmem %s5, %s264
      %p266 = pneg %p189
      %p267 = pneg %p186
      %p268 = scmp.lt.s32.totalorder %s22, 1
      %s269 = scalar_select %p268, %s22, 1
      %s270 = smul.addr %s269, 16
      %s271 = smul.addr %s270, 8
      %s272 = scalar_lea.vmem %s6, %s271
      %s273 = smul.u32 2, %s23
      %p274 = scmp.lt.s32.totalorder %s22, 1
      %s275 = scalar_select %p274, %s22, 1
      %p276 = scmp.lt.s32.totalorder %s273, 1
      %s277 = scalar_select %p276, %s273, 1
      %s278 = smul.addr %s275, 2
      %s279 = sadd.s32 %s277, %s278
      %s280 = smul.addr %s279, 4
      %s281 = scalar_lea.vmem %s0, %s280
      %s282 = smul.u32 2, %s23
      %p283 = scmp.lt.s32.totalorder %s22, 1
      %s284 = scalar_select %p283, %s22, 1
      %s285 = smul.addr %s284, 16
      %s286 = smul.addr %s285, 8
      %s287 = scalar_lea.vmem %s5, %s286
      %p288 = scmp.lt.s32.totalorder %s22, 1
      %s289 = scalar_select %p288, %s22, 1
      %s290 = smul.addr %s289, 16
      %s291 = smul.addr %s290, 8
      %s292 = scalar_lea.vmem %s6, %s291
      %p293 = scmp.eq.s32.totalorder %s23, 0
      // Predicated region
      $region41: #{tpu_custom_call.1} parent=39 // pred_check
        %p294 = pneg %p293
      $region42: #{tpu_custom_call.1} parent=39 // pred_check_branch
        %296 = sbr.rel (%p294) target = $region44
      $region43: #{tpu_custom_call.1} parent=39 // pred_region
        %vm297 = vcmask 7168
        %298 = vst.msk [vmem:[%s287] sm:$0xff] %vm297, 0.0
        %299 = vst.msk [vmem:[%s287 + $0x8] sm:$0xff] %vm297, 0.0
        %300 = vst.msk [vmem:[%s287 + $0x10] sm:$0xff] %vm297, 0.0
        %301 = vst.msk [vmem:[%s287 + $0x18] sm:$0xff] %vm297, 0.0
        %302 = vst.msk [vmem:[%s287 + $0x20] sm:$0xff] %vm297, 0.0
        %303 = vst.msk [vmem:[%s287 + $0x28] sm:$0xff] %vm297, 0.0
        %304 = vst.msk [vmem:[%s287 + $0x30] sm:$0xff] %vm297, 0.0
        %305 = vst.msk [vmem:[%s287 + $0x38] sm:$0xff] %vm297, 0.0
        %306 = vst.msk [vmem:[%s287 + $0x40] sm:$0xff] %vm297, 0.0
        %307 = vst.msk [vmem:[%s287 + $0x48] sm:$0xff] %vm297, 0.0
        %308 = vst.msk [vmem:[%s287 + $0x50] sm:$0xff] %vm297, 0.0
        %309 = vst.msk [vmem:[%s287 + $0x58] sm:$0xff] %vm297, 0.0
        %310 = vst.msk [vmem:[%s287 + $0x60] sm:$0xff] %vm297, 0.0
        %311 = vst.msk [vmem:[%s287 + $0x68] sm:$0xff] %vm297, 0.0
        %312 = vst.msk [vmem:[%s287 + $0x70] sm:$0xff] %vm297, 0.0
        %313 = vst.msk [vmem:[%s287 + $0x78] sm:$0xff] %vm297, 0.0
        %314 = vst.msk [vmem:[%s292] sm:$0xff] %vm297, 0.0
        %315 = vst.msk [vmem:[%s292 + $0x8] sm:$0xff] %vm297, 0.0
        %316 = vst.msk [vmem:[%s292 + $0x10] sm:$0xff] %vm297, 0.0
        %317 = vst.msk [vmem:[%s292 + $0x18] sm:$0xff] %vm297, 0.0
        %318 = vst.msk [vmem:[%s292 + $0x20] sm:$0xff] %vm297, 0.0
        %319 = vst.msk [vmem:[%s292 + $0x28] sm:$0xff] %vm297, 0.0
        %320 = vst.msk [vmem:[%s292 + $0x30] sm:$0xff] %vm297, 0.0
        %321 = vst.msk [vmem:[%s292 + $0x38] sm:$0xff] %vm297, 0.0
        %322 = vst.msk [vmem:[%s292 + $0x40] sm:$0xff] %vm297, 0.0
        %323 = vst.msk [vmem:[%s292 + $0x48] sm:$0xff] %vm297, 0.0
        %324 = vst.msk [vmem:[%s292 + $0x50] sm:$0xff] %vm297, 0.0
        %325 = vst.msk [vmem:[%s292 + $0x58] sm:$0xff] %vm297, 0.0
        %326 = vst.msk [vmem:[%s292 + $0x60] sm:$0xff] %vm297, 0.0
        %327 = vst.msk [vmem:[%s292 + $0x68] sm:$0xff] %vm297, 0.0
        %328 = vst.msk [vmem:[%s292 + $0x70] sm:$0xff] %vm297, 0.0
        %329 = vst.msk [vmem:[%s292 + $0x78] sm:$0xff] %vm297, 0.0
      $region44: #{tpu_custom_call.1} parent=39 // pred_fallthru
        _
      %v330 = vld [vmem:[%s281] sm:$0xff]
      %v331 = vld [vmem:[%s1] sm:$0xff]
      %v332 = vld [vmem:[%s1 + $0x8] sm:$0xff]
      %v333 = vld [vmem:[%s1 + $0x10] sm:$0xff]
      %v334 = vld [vmem:[%s1 + $0x18] sm:$0xff]
      %v335 = vld [vmem:[%s1 + $0x20] sm:$0xff]
      %v336 = vld [vmem:[%s1 + $0x28] sm:$0xff]
      %v337 = vld [vmem:[%s1 + $0x30] sm:$0xff]
      %v338 = vld [vmem:[%s1 + $0x38] sm:$0xff]
      %v339 = vld [vmem:[%s2] sm:$0xff]
      %v340 = vld [vmem:[%s2 + $0x8] sm:$0xff]
      %v341 = vld [vmem:[%s2 + $0x10] sm:$0xff]
      %v342 = vld [vmem:[%s2 + $0x18] sm:$0xff]
      %v343 = vld [vmem:[%s2 + $0x20] sm:$0xff]
      %v344 = vld [vmem:[%s2 + $0x28] sm:$0xff]
      %v345 = vld [vmem:[%s2 + $0x30] sm:$0xff]
      %v346 = vld [vmem:[%s2 + $0x38] sm:$0xff]
      %348 = vset.pattern.permute.xlu0 0
      %349 = vperm.xlu0 %348, %v339
      %v350 = vpop.permute.xlu0 %349
      %353 = vset.pattern.permute.xlu0 0
      %354 = vperm.xlu0 %353, %v340
      %v355 = vpop.permute.xlu0 %354
      %358 = vset.pattern.permute.xlu0 0
      %359 = vperm.xlu0 %358, %v341
      %v360 = vpop.permute.xlu0 %359
      %363 = vset.pattern.permute.xlu0 0
      %364 = vperm.xlu0 %363, %v342
      %v365 = vpop.permute.xlu0 %364
      %368 = vset.pattern.permute.xlu0 0
      %369 = vperm.xlu0 %368, %v343
      %v370 = vpop.permute.xlu0 %369
      %373 = vset.pattern.permute.xlu0 0
      %374 = vperm.xlu0 %373, %v344
      %v375 = vpop.permute.xlu0 %374
      %378 = vset.pattern.permute.xlu0 0
      %379 = vperm.xlu0 %378, %v345
      %v380 = vpop.permute.xlu0 %379
      %383 = vset.pattern.permute.xlu0 0
      %384 = vperm.xlu0 %383, %v346
      %v385 = vpop.permute.xlu0 %384
      %v388 = vcombine.high %v330, %v330
      %vm389 = vcmask 31744
      %v391 = vsel %vm389, %v331, 0
      %v394 = vsel %vm389, %v332, 0
      %v397 = vsel %vm389, %v333, 0
      %v400 = vsel %vm389, %v334, 0
      %v403 = vsel %vm389, %v335, 0
      %v406 = vsel %vm389, %v336, 0
      %v409 = vsel %vm389, %v337, 0
      %v412 = vsel %vm389, %v338, 0
      %vm414 = vcmask 1043456
      %v415 = vsel %vm414, %v330, 0
      %v417 = vsel %vm414, %v388, 0
      %419 = vmatprep.subr.mxu0 %v417
      %420 = vmatpush1.msra.mxu0 %v415
      %421 = vmatprep.subr.mxu0 0.0
      %422 = vmatpush1.msra.mxu0 0.0
      %423 = vmatprep.subr.mxu0 0.0
      %424 = vmatpush1.msra.mxu0 0.0
      %425 = vmatprep.subr.mxu0 0.0
      %426 = vmatpush1.msra.mxu0 0.0
      %427 = vmatprep.subr.mxu0 0.0
      %428 = vmatpush1.msra.mxu0 0.0
      %429 = vmatprep.subr.mxu0 0.0
      %430 = vmatpush1.msra.mxu0 0.0
      %431 = vmatprep.subr.mxu0 0.0
      %432 = vmatpush1.msra.mxu0 0.0
      %433 = vmatprep.subr.mxu0 0.0
      %434 = vmatpush1.msra.mxu0 0.0
      %435 = vmatprep.subr.mxu0 0.0
      %436 = vmatpush1.msra.mxu0 0.0
      %437 = vmatprep.subr.mxu0 0.0
      %438 = vmatpush1.msra.mxu0 0.0
      %439 = vmatprep.subr.mxu0 0.0
      %440 = vmatpush1.msra.mxu0 0.0
      %441 = vmatprep.subr.mxu0 0.0
      %442 = vmatpush1.msra.mxu0 0.0
      %443 = vmatprep.subr.mxu0 0.0
      %444 = vmatpush1.msra.mxu0 0.0
      %445 = vmatprep.subr.mxu0 0.0
      %446 = vmatpush1.msra.mxu0 0.0
      %447 = vmatprep.subr.mxu0 0.0
      %448 = vmatpush1.msra.mxu0 0.0
      %449 = vmatprep.subr.mxu0 0.0
      %450 = vmatpush1.msra.mxu0 0.0
      %451 = vmatprep.subr.mxu0 0.0
      %452 = vmatpush1.msra.mxu0 0.0
      %453 = vmatprep.subr.mxu0 0.0
      %454 = vmatpush1.msra.mxu0 0.0
      %455 = vmatprep.subr.mxu0 0.0
      %456 = vmatpush1.msra.mxu0 0.0
      %457 = vmatprep.subr.mxu0 0.0
      %458 = vmatpush1.msra.mxu0 0.0
      %459 = vmatprep.subr.mxu0 0.0
      %460 = vmatpush1.msra.mxu0 0.0
      %461 = vmatprep.subr.mxu0 0.0
      %462 = vmatpush1.msra.mxu0 0.0
      %463 = vmatprep.subr.mxu0 0.0
      %464 = vmatpush1.msra.mxu0 0.0
      %465 = vmatprep.subr.mxu0 0.0
      %466 = vmatpush1.msra.mxu0 0.0
      %467 = vmatprep.subr.mxu0 0.0
      %468 = vmatpush1.msra.mxu0 0.0
      %469 = vmatprep.subr.mxu0 0.0
      %470 = vmatpush1.msra.mxu0 0.0
      %471 = vmatprep.subr.mxu0 0.0
      %472 = vmatpush1.msra.mxu0 0.0
      %473 = vmatprep.subr.mxu0 0.0
      %474 = vmatpush1.msra.mxu0 0.0
      %475 = vmatprep.subr.mxu0 0.0
      %476 = vmatpush1.msra.mxu0 0.0
      %477 = vmatprep.subr.mxu0 0.0
      %478 = vmatpush1.msra.mxu0 0.0
      %479 = vmatprep.subr.mxu0 0.0
      %480 = vmatpush1.msra.mxu0 0.0
      %481 = vmatprep.subr.mxu0 0.0
      %482 = vmatpush1.msra.mxu0 0.0
      %483 = vmatprep.mubr.f32.mxu0 0.0
      %484 = vmatmul.mubr.f32.gmra.mrb[0].mxu0 %v391
      %v485 = vpop.f32.mrb[0].mxu0
      %v486 = vadd.f32 %v350, %v485
      %v487 = vpop.f32.mrb[0].mxu0
      %v488 = vadd.f32 %v350, %v487
      %489 = vmatprep.mubr.f32.mxu0 0.0
      %490 = vmatmul.mubr.f32.gmra.mrb[0].mxu0 %v394
      %v491 = vpop.f32.mrb[0].mxu0
      %v492 = vadd.f32 %v355, %v491
      %v493 = vpop.f32.mrb[0].mxu0
      %v494 = vadd.f32 %v355, %v493
      %495 = vmatprep.mubr.f32.mxu0 0.0
      %496 = vmatmul.mubr.f32.gmra.mrb[0].mxu0 %v397
      %v497 = vpop.f32.mrb[0].mxu0
      %v498 = vadd.f32 %v360, %v497
      %v499 = vpop.f32.mrb[0].mxu0
      %v500 = vadd.f32 %v360, %v499
      %501 = vmatprep.mubr.f32.mxu0 0.0
      %502 = vmatmul.mubr.f32.gmra.mrb[0].mxu0 %v400
      %v503 = vpop.f32.mrb[0].mxu0
      %v504 = vadd.f32 %v365, %v503
      %v505 = vpop.f32.mrb[0].mxu0
      %v506 = vadd.f32 %v365, %v505
      %507 = vmatprep.mubr.f32.mxu0 0.0
      %508 = vmatmul.mubr.f32.gmra.mrb[0].mxu0 %v403
      %v509 = vpop.f32.mrb[0].mxu0
      %v510 = vadd.f32 %v370, %v509
      %v511 = vpop.f32.mrb[0].mxu0
      %v512 = vadd.f32 %v370, %v511
      %513 = vmatprep.mubr.f32.mxu0 0.0
      %514 = vmatmul.mubr.f32.gmra.mrb[0].mxu0 %v406
      %v515 = vpop.f32.mrb[0].mxu0
      %v516 = vadd.f32 %v375, %v515
      %v517 = vpop.f32.mrb[0].mxu0
      %v518 = vadd.f32 %v375, %v517
      %519 = vmatprep.mubr.f32.mxu0 0.0
      %520 = vmatmul.mubr.f32.gmra.mrb[0].mxu0 %v409
      %v521 = vpop.f32.mrb[0].mxu0
      %v522 = vadd.f32 %v380, %v521
      %v523 = vpop.f32.mrb[0].mxu0
      %v524 = vadd.f32 %v380, %v523
      %525 = vmatprep.mubr.f32.mxu0 0.0
      %526 = vmatmul.mubr.f32.gmra.mrb[0].mxu0 %v412
      %v527 = vpop.f32.mrb[0].mxu0
      %v528 = vadd.f32 %v385, %v527
      %v529 = vpop.f32.mrb[0].mxu0
      %v530 = vadd.f32 %v385, %v529
      %531 = vdwg.mxu0
      %vm532 = vcmp.gt.f32.partialorder %v486, 0.0
      %vm533 = vcmp.gt.f32.partialorder %v488, 0.0
      %vm534 = vcmp.gt.f32.partialorder %v492, 0.0
      %vm535 = vcmp.gt.f32.partialorder %v494, 0.0
      %vm536 = vcmp.gt.f32.partialorder %v498, 0.0
      %vm537 = vcmp.gt.f32.partialorder %v500, 0.0
      %vm538 = vcmp.gt.f32.partialorder %v504, 0.0
      %vm539 = vcmp.gt.f32.partialorder %v506, 0.0
      %vm540 = vcmp.gt.f32.partialorder %v510, 0.0
      %vm541 = vcmp.gt.f32.partialorder %v512, 0.0
      %vm542 = vcmp.gt.f32.partialorder %v516, 0.0
      %vm543 = vcmp.gt.f32.partialorder %v518, 0.0
      %vm544 = vcmp.gt.f32.partialorder %v522, 0.0
      %vm545 = vcmp.gt.f32.partialorder %v524, 0.0
      %vm546 = vcmp.gt.f32.partialorder %v528, 0.0
      %vm547 = vcmp.gt.f32.partialorder %v530, 0.0
      %v548 = vmul.f32 %v486, 0.2
      %v549 = vmul.f32 %v488, 0.2
      %v550 = vmul.f32 %v492, 0.2
      %v551 = vmul.f32 %v494, 0.2
      %v552 = vmul.f32 %v498, 0.2
      %v553 = vmul.f32 %v500, 0.2
      %v554 = vmul.f32 %v504, 0.2
      %v555 = vmul.f32 %v506, 0.2
      %v556 = vmul.f32 %v510, 0.2
      %v557 = vmul.f32 %v512, 0.2
      %v558 = vmul.f32 %v516, 0.2
      %v559 = vmul.f32 %v518, 0.2
      %v560 = vmul.f32 %v522, 0.2
      %v561 = vmul.f32 %v524, 0.2
      %v562 = vmul.f32 %v528, 0.2
      %v563 = vmul.f32 %v530, 0.2
      %v564 = vsel %vm532, %v486, %v548
      %v565 = vsel %vm533, %v488, %v549
      %v566 = vsel %vm534, %v492, %v550
      %v567 = vsel %vm535, %v494, %v551
      %v568 = vsel %vm536, %v498, %v552
      %v569 = vsel %vm537, %v500, %v553
      %v570 = vsel %vm538, %v504, %v554
      %v571 = vsel %vm539, %v506, %v555
      %v572 = vsel %vm540, %v510, %v556
      %v573 = vsel %vm541, %v512, %v557
      %v574 = vsel %vm542, %v516, %v558
      %v575 = vsel %vm543, %v518, %v559
      %v576 = vsel %vm544, %v522, %v560
      %v577 = vsel %vm545, %v524, %v561
      %v578 = vsel %vm546, %v528, %v562
      %v579 = vsel %vm547, %v530, %v563
      %v580 = vld [vmem:[%s3] sm:$0xff]
      %v581 = vld [vmem:[%s3 + $0x8] sm:$0xff]
      %v582 = vld [vmem:[%s3 + $0x10] sm:$0xff]
      %v583 = vld [vmem:[%s3 + $0x18] sm:$0xff]
      %v584 = vld [vmem:[%s3 + $0x20] sm:$0xff]
      %v585 = vld [vmem:[%s3 + $0x28] sm:$0xff]
      %v586 = vld [vmem:[%s3 + $0x30] sm:$0xff]
      %v587 = vld [vmem:[%s3 + $0x38] sm:$0xff]
      %v588 = vld [vmem:[%s3 + $0x40] sm:$0xff]
      %v589 = vld [vmem:[%s3 + $0x48] sm:$0xff]
      %v590 = vld [vmem:[%s3 + $0x50] sm:$0xff]
      %v591 = vld [vmem:[%s3 + $0x58] sm:$0xff]
      %v592 = vld [vmem:[%s3 + $0x60] sm:$0xff]
      %v593 = vld [vmem:[%s3 + $0x68] sm:$0xff]
      %v594 = vld [vmem:[%s3 + $0x70] sm:$0xff]
      %v595 = vld [vmem:[%s3 + $0x78] sm:$0xff]
      %v596 = vld [vmem:[%s4] sm:$0xff]
      %v597 = vld [vmem:[%s4 + $0x8] sm:$0xff]
      %v598 = vld [vmem:[%s4 + $0x10] sm:$0xff]
      %v599 = vld [vmem:[%s4 + $0x18] sm:$0xff]
      %v600 = vld [vmem:[%s4 + $0x20] sm:$0xff]
      %v601 = vld [vmem:[%s4 + $0x28] sm:$0xff]
      %v602 = vld [vmem:[%s4 + $0x30] sm:$0xff]
      %v603 = vld [vmem:[%s4 + $0x38] sm:$0xff]
      %v604 = vld [vmem:[%s4 + $0x40] sm:$0xff]
      %v605 = vld [vmem:[%s4 + $0x48] sm:$0xff]
      %v606 = vld [vmem:[%s4 + $0x50] sm:$0xff]
      %v607 = vld [vmem:[%s4 + $0x58] sm:$0xff]
      %v608 = vld [vmem:[%s4 + $0x60] sm:$0xff]
      %v609 = vld [vmem:[%s4 + $0x68] sm:$0xff]
      %v610 = vld [vmem:[%s4 + $0x70] sm:$0xff]
      %v611 = vld [vmem:[%s4 + $0x78] sm:$0xff]
      %613 = vset.pattern.permute.xlu0 0
      %614 = vperm.xlu0 %613, %v596
      %v615 = vpop.permute.xlu0 %614
      %618 = vset.pattern.permute.xlu0 0
      %619 = vperm.xlu0 %618, %v597
      %v620 = vpop.permute.xlu0 %619
      %623 = vset.pattern.permute.xlu0 0
      %624 = vperm.xlu0 %623, %v598
      %v625 = vpop.permute.xlu0 %624
      %628 = vset.pattern.permute.xlu0 0
      %629 = vperm.xlu0 %628, %v599
      %v630 = vpop.permute.xlu0 %629
      %633 = vset.pattern.permute.xlu0 0
      %634 = vperm.xlu0 %633, %v600
      %v635 = vpop.permute.xlu0 %634
      %638 = vset.pattern.permute.xlu0 0
      %639 = vperm.xlu0 %638, %v601
      %v640 = vpop.permute.xlu0 %639
      %643 = vset.pattern.permute.xlu0 0
      %644 = vperm.xlu0 %643, %v602
      %v645 = vpop.permute.xlu0 %644
      %648 = vset.pattern.permute.xlu0 0
      %649 = vperm.xlu0 %648, %v603
      %v650 = vpop.permute.xlu0 %649
      %653 = vset.pattern.permute.xlu0 0
      %654 = vperm.xlu0 %653, %v604
      %v655 = vpop.permute.xlu0 %654
      %658 = vset.pattern.permute.xlu0 0
      %659 = vperm.xlu0 %658, %v605
      %v660 = vpop.permute.xlu0 %659
      %663 = vset.pattern.permute.xlu0 0
      %664 = vperm.xlu0 %663, %v606
      %v665 = vpop.permute.xlu0 %664
      %668 = vset.pattern.permute.xlu0 0
      %669 = vperm.xlu0 %668, %v607
      %v670 = vpop.permute.xlu0 %669
      %673 = vset.pattern.permute.xlu0 0
      %674 = vperm.xlu0 %673, %v608
      %v675 = vpop.permute.xlu0 %674
      %678 = vset.pattern.permute.xlu0 0
      %679 = vperm.xlu0 %678, %v609
      %v680 = vpop.permute.xlu0 %679
      %683 = vset.pattern.permute.xlu0 0
      %684 = vperm.xlu0 %683, %v610
      %v685 = vpop.permute.xlu0 %684
      %688 = vset.pattern.permute.xlu0 0
      %689 = vperm.xlu0 %688, %v611
      %v690 = vpop.permute.xlu0 %689
      %vm692 = vcmask 523264
      %v694 = vsel %vm692, %v580, 0
      %v697 = vsel %vm692, %v581, 0
      %v700 = vsel %vm692, %v582, 0
      %v703 = vsel %vm692, %v583, 0
      %v706 = vsel %vm692, %v584, 0
      %v709 = vsel %vm692, %v585, 0
      %v712 = vsel %vm692, %v586, 0
      %v715 = vsel %vm692, %v587, 0
      %v718 = vsel %vm692, %v588, 0
      %v721 = vsel %vm692, %v589, 0
      %v724 = vsel %vm692, %v590, 0
      %v727 = vsel %vm692, %v591, 0
      %v730 = vsel %vm692, %v592, 0
      %v733 = vsel %vm692, %v593, 0
      %v736 = vsel %vm692, %v594, 0
      %v739 = vsel %vm692, %v595, 0
      %741 = vmatprep.subr.mxu0 %v565
      %742 = vmatpush1.msra.mxu0 %v564
      %743 = vmatprep.subr.mxu0 %v567
      %744 = vmatpush1.msra.mxu0 %v566
      %745 = vmatprep.subr.mxu0 %v569
      %746 = vmatpush1.msra.mxu0 %v568
      %747 = vmatprep.subr.mxu0 %v571
      %748 = vmatpush1.msra.mxu0 %v570
      %749 = vmatprep.subr.mxu0 %v573
      %750 = vmatpush1.msra.mxu0 %v572
      %751 = vmatprep.subr.mxu0 %v575
      %752 = vmatpush1.msra.mxu0 %v574
      %753 = vmatprep.subr.mxu0 %v577
      %754 = vmatpush1.msra.mxu0 %v576
      %755 = vmatprep.subr.mxu0 %v579
      %756 = vmatpush1.msra.mxu0 %v578
      %757 = vmatprep.subr.mxu0 0.0
      %758 = vmatpush1.msra.mxu0 0.0
      %759 = vmatprep.subr.mxu0 0.0
      %760 = vmatpush1.msra.mxu0 0.0
      %761 = vmatprep.subr.mxu0 0.0
      %762 = vmatpush1.msra.mxu0 0.0
      %763 = vmatprep.subr.mxu0 0.0
      %764 = vmatpush1.msra.mxu0 0.0
      %765 = vmatprep.subr.mxu0 0.0
      %766 = vmatpush1.msra.mxu0 0.0
      %767 = vmatprep.subr.mxu0 0.0
      %768 = vmatpush1.msra.mxu0 0.0
      %769 = vmatprep.subr.mxu0 0.0
      %770 = vmatpush1.msra.mxu0 0.0
      %771 = vmatprep.subr.mxu0 0.0
      %772 = vmatpush1.msra.mxu0 0.0
      %773 = vmatprep.subr.mxu0 0.0
      %774 = vmatpush1.msra.mxu0 0.0
      %775 = vmatprep.subr.mxu0 0.0
      %776 = vmatpush1.msra.mxu0 0.0
      %777 = vmatprep.subr.mxu0 0.0
      %778 = vmatpush1.msra.mxu0 0.0
      %779 = vmatprep.subr.mxu0 0.0
      %780 = vmatpush1.msra.mxu0 0.0
      %781 = vmatprep.subr.mxu0 0.0
      %782 = vmatpush1.msra.mxu0 0.0
      %783 = vmatprep.subr.mxu0 0.0
      %784 = vmatpush1.msra.mxu0 0.0
      %785 = vmatprep.subr.mxu0 0.0
      %786 = vmatpush1.msra.mxu0 0.0
      %787 = vmatprep.subr.mxu0 0.0
      %788 = vmatpush1.msra.mxu0 0.0
      %789 = vmatprep.subr.mxu0 0.0
      %790 = vmatpush1.msra.mxu0 0.0
      %791 = vmatprep.subr.mxu0 0.0
      %792 = vmatpush1.msra.mxu0 0.0
      %793 = vmatprep.subr.mxu0 0.0
      %794 = vmatpush1.msra.mxu0 0.0
      %795 = vmatprep.subr.mxu0 0.0
      %796 = vmatpush1.msra.mxu0 0.0
      %797 = vmatprep.subr.mxu0 0.0
      %798 = vmatpush1.msra.mxu0 0.0
      %799 = vmatprep.subr.mxu0 0.0
      %800 = vmatpush1.msra.mxu0 0.0
      %801 = vmatprep.subr.mxu0 0.0
      %802 = vmatpush1.msra.mxu0 0.0
      %803 = vmatprep.subr.mxu0 0.0
      %804 = vmatpush1.msra.mxu0 0.0
      %805 = vmatprep.mubr.f32.mxu0 0.0
      %806 = vmatmul.mubr.f32.gmra.mrb[0].mxu0 %v694
      %v807 = vpop.f32.mrb[0].mxu0
      %v808 = vadd.f32 %v615, %v807
      %v809 = vpop.f32.mrb[0].mxu0
      %v810 = vadd.f32 %v615, %v809
      %811 = vmatprep.mubr.f32.mxu0 0.0
      %812 = vmatmul.mubr.f32.gmra.mrb[0].mxu0 %v697
      %v813 = vpop.f32.mrb[0].mxu0
      %v814 = vadd.f32 %v620, %v813
      %v815 = vpop.f32.mrb[0].mxu0
      %v816 = vadd.f32 %v620, %v815
      %817 = vmatprep.mubr.f32.mxu0 0.0
      %818 = vmatmul.mubr.f32.gmra.mrb[0].mxu0 %v700
      %v819 = vpop.f32.mrb[0].mxu0
      %v820 = vadd.f32 %v625, %v819
      %v821 = vpop.f32.mrb[0].mxu0
      %v822 = vadd.f32 %v625, %v821
      %823 = vmatprep.mubr.f32.mxu0 0.0
      %824 = vmatmul.mubr.f32.gmra.mrb[0].mxu0 %v703
      %v825 = vpop.f32.mrb[0].mxu0
      %v826 = vadd.f32 %v630, %v825
      %v827 = vpop.f32.mrb[0].mxu0
      %v828 = vadd.f32 %v630, %v827
      %829 = vmatprep.mubr.f32.mxu0 0.0
      %830 = vmatmul.mubr.f32.gmra.mrb[0].mxu0 %v706
      %v831 = vpop.f32.mrb[0].mxu0
      %v832 = vadd.f32 %v635, %v831
      %v833 = vpop.f32.mrb[0].mxu0
      %v834 = vadd.f32 %v635, %v833
      %835 = vmatprep.mubr.f32.mxu0 0.0
      %836 = vmatmul.mubr.f32.gmra.mrb[0].mxu0 %v709
      %v837 = vpop.f32.mrb[0].mxu0
      %v838 = vadd.f32 %v640, %v837
      %v839 = vpop.f32.mrb[0].mxu0
      %v840 = vadd.f32 %v640, %v839
      %841 = vmatprep.mubr.f32.mxu0 0.0
      %842 = vmatmul.mubr.f32.gmra.mrb[0].mxu0 %v712
      %v843 = vpop.f32.mrb[0].mxu0
      %v844 = vadd.f32 %v645, %v843
      %v845 = vpop.f32.mrb[0].mxu0
      %v846 = vadd.f32 %v645, %v845
      %847 = vmatprep.mubr.f32.mxu0 0.0
      %848 = vmatmul.mubr.f32.gmra.mrb[0].mxu0 %v715
      %v849 = vpop.f32.mrb[0].mxu0
      %v850 = vadd.f32 %v650, %v849
      %v851 = vpop.f32.mrb[0].mxu0
      %v852 = vadd.f32 %v650, %v851
      %853 = vmatprep.mubr.f32.mxu0 0.0
      %854 = vmatmul.mubr.f32.gmra.mrb[0].mxu0 %v718
      %v855 = vpop.f32.mrb[0].mxu0
      %v856 = vadd.f32 %v655, %v855
      %v857 = vpop.f32.mrb[0].mxu0
      %v858 = vadd.f32 %v655, %v857
      %859 = vmatprep.mubr.f32.mxu0 0.0
      %860 = vmatmul.mubr.f32.gmra.mrb[0].mxu0 %v721
      %v861 = vpop.f32.mrb[0].mxu0
      %v862 = vadd.f32 %v660, %v861
      %v863 = vpop.f32.mrb[0].mxu0
      %v864 = vadd.f32 %v660, %v863
      %865 = vmatprep.mubr.f32.mxu0 0.0
      %866 = vmatmul.mubr.f32.gmra.mrb[0].mxu0 %v724
      %v867 = vpop.f32.mrb[0].mxu0
      %v868 = vadd.f32 %v665, %v867
      %v869 = vpop.f32.mrb[0].mxu0
      %v870 = vadd.f32 %v665, %v869
      %871 = vmatprep.mubr.f32.mxu0 0.0
      %872 = vmatmul.mubr.f32.gmra.mrb[0].mxu0 %v727
      %v873 = vpop.f32.mrb[0].mxu0
      %v874 = vadd.f32 %v670, %v873
      %v875 = vpop.f32.mrb[0].mxu0
      %v876 = vadd.f32 %v670, %v875
      %877 = vmatprep.mubr.f32.mxu0 0.0
      %878 = vmatmul.mubr.f32.gmra.mrb[0].mxu0 %v730
      %v879 = vpop.f32.mrb[0].mxu0
      %v880 = vadd.f32 %v675, %v879
      %v881 = vpop.f32.mrb[0].mxu0
      %v882 = vadd.f32 %v675, %v881
      %883 = vmatprep.mubr.f32.mxu0 0.0
      %884 = vmatmul.mubr.f32.gmra.mrb[0].mxu0 %v733
      %v885 = vpop.f32.mrb[0].mxu0
      %v886 = vadd.f32 %v680, %v885
      %v887 = vpop.f32.mrb[0].mxu0
      %v888 = vadd.f32 %v680, %v887
      %889 = vmatprep.mubr.f32.mxu0 0.0
      %890 = vmatmul.mubr.f32.gmra.mrb[0].mxu0 %v736
      %v891 = vpop.f32.mrb[0].mxu0
      %v892 = vadd.f32 %v685, %v891
      %v893 = vpop.f32.mrb[0].mxu0
      %v894 = vadd.f32 %v685, %v893
      %895 = vmatprep.mubr.f32.mxu0 0.0
      %896 = vmatmul.mubr.f32.gmra.mrb[0].mxu0 %v739
      %v897 = vpop.f32.mrb[0].mxu0
      %v898 = vadd.f32 %v690, %v897
      %v899 = vpop.f32.mrb[0].mxu0
      %v900 = vadd.f32 %v690, %v899
      %901 = vdwg.mxu0
      %v902 = vld [vmem:[%s287] sm:$0xff]
      %v903 = vld [vmem:[%s287 + $0x8] sm:$0xff]
      %v904 = vld [vmem:[%s287 + $0x10] sm:$0xff]
      %v905 = vld [vmem:[%s287 + $0x18] sm:$0xff]
      %v906 = vld [vmem:[%s287 + $0x20] sm:$0xff]
      %v907 = vld [vmem:[%s287 + $0x28] sm:$0xff]
      %v908 = vld [vmem:[%s287 + $0x30] sm:$0xff]
      %v909 = vld [vmem:[%s287 + $0x38] sm:$0xff]
      %v910 = vld [vmem:[%s287 + $0x40] sm:$0xff]
      %v911 = vld [vmem:[%s287 + $0x48] sm:$0xff]
      %v912 = vld [vmem:[%s287 + $0x50] sm:$0xff]
      %v913 = vld [vmem:[%s287 + $0x58] sm:$0xff]
      %v914 = vld [vmem:[%s287 + $0x60] sm:$0xff]
      %v915 = vld [vmem:[%s287 + $0x68] sm:$0xff]
      %v916 = vld [vmem:[%s287 + $0x70] sm:$0xff]
      %v917 = vld [vmem:[%s287 + $0x78] sm:$0xff]
      %v918 = vadd.f32 %v808, %v810
      %919 = vadd.xlane.f32.xlu0 %v918
      %v920 = vpop.xlane.xlu0 %919
      %v921 = vadd.f32 %v814, %v816
      %922 = vadd.xlane.f32.xlu0 %v921
      %v923 = vpop.xlane.xlu0 %922
      %v924 = vadd.f32 %v820, %v822
      %925 = vadd.xlane.f32.xlu0 %v924
      %v926 = vpop.xlane.xlu0 %925
      %v927 = vadd.f32 %v826, %v828
      %928 = vadd.xlane.f32.xlu0 %v927
      %v929 = vpop.xlane.xlu0 %928
      %v930 = vadd.f32 %v832, %v834
      %931 = vadd.xlane.f32.xlu0 %v930
      %v932 = vpop.xlane.xlu0 %931
      %v933 = vadd.f32 %v838, %v840
      %934 = vadd.xlane.f32.xlu0 %v933
      %v935 = vpop.xlane.xlu0 %934
      %v936 = vadd.f32 %v844, %v846
      %937 = vadd.xlane.f32.xlu0 %v936
      %v938 = vpop.xlane.xlu0 %937
      %v939 = vadd.f32 %v850, %v852
      %940 = vadd.xlane.f32.xlu0 %v939
      %v941 = vpop.xlane.xlu0 %940
      %v942 = vadd.f32 %v856, %v858
      %943 = vadd.xlane.f32.xlu0 %v942
      %v944 = vpop.xlane.xlu0 %943
      %v945 = vadd.f32 %v862, %v864
      %946 = vadd.xlane.f32.xlu0 %v945
      %v947 = vpop.xlane.xlu0 %946
      %v948 = vadd.f32 %v868, %v870
      %949 = vadd.xlane.f32.xlu0 %v948
      %v950 = vpop.xlane.xlu0 %949
      %v951 = vadd.f32 %v874, %v876
      %952 = vadd.xlane.f32.xlu0 %v951
      %v953 = vpop.xlane.xlu0 %952
      %v954 = vadd.f32 %v880, %v882
      %955 = vadd.xlane.f32.xlu0 %v954
      %v956 = vpop.xlane.xlu0 %955
      %v957 = vadd.f32 %v886, %v888
      %958 = vadd.xlane.f32.xlu0 %v957
      %v959 = vpop.xlane.xlu0 %958
      %v960 = vadd.f32 %v892, %v894
      %961 = vadd.xlane.f32.xlu0 %v960
      %v962 = vpop.xlane.xlu0 %961
      %v963 = vadd.f32 %v898, %v900
      %964 = vadd.xlane.f32.xlu0 %v963
      %v965 = vpop.xlane.xlu0 %964
      %v966 = vadd.f32 %v902, %v920
      %v967 = vadd.f32 %v903, %v923
      %v968 = vadd.f32 %v904, %v926
      %v969 = vadd.f32 %v905, %v929
      %v970 = vadd.f32 %v906, %v932
      %v971 = vadd.f32 %v907, %v935
      %v972 = vadd.f32 %v908, %v938
      %v973 = vadd.f32 %v909, %v941
      %v974 = vadd.f32 %v910, %v944
      %v975 = vadd.f32 %v911, %v947
      %v976 = vadd.f32 %v912, %v950
      %v977 = vadd.f32 %v913, %v953
      %v978 = vadd.f32 %v914, %v956
      %v979 = vadd.f32 %v915, %v959
      %v980 = vadd.f32 %v916, %v962
      %v981 = vadd.f32 %v917, %v965
      %vm982 = vcmask 7168
      %983 = vst.msk [vmem:[%s287] sm:$0xff] %vm982, %v966
      %984 = vst.msk [vmem:[%s287 + $0x8] sm:$0xff] %vm982, %v967
      %985 = vst.msk [vmem:[%s287 + $0x10] sm:$0xff] %vm982, %v968
      %986 = vst.msk [vmem:[%s287 + $0x18] sm:$0xff] %vm982, %v969
      %987 = vst.msk [vmem:[%s287 + $0x20] sm:$0xff] %vm982, %v970
      %988 = vst.msk [vmem:[%s287 + $0x28] sm:$0xff] %vm982, %v971
      %989 = vst.msk [vmem:[%s287 + $0x30] sm:$0xff] %vm982, %v972
      %990 = vst.msk [vmem:[%s287 + $0x38] sm:$0xff] %vm982, %v973
      %991 = vst.msk [vmem:[%s287 + $0x40] sm:$0xff] %vm982, %v974
      %992 = vst.msk [vmem:[%s287 + $0x48] sm:$0xff] %vm982, %v975
      %993 = vst.msk [vmem:[%s287 + $0x50] sm:$0xff] %vm982, %v976
      %994 = vst.msk [vmem:[%s287 + $0x58] sm:$0xff] %vm982, %v977
      %995 = vst.msk [vmem:[%s287 + $0x60] sm:$0xff] %vm982, %v978
      %996 = vst.msk [vmem:[%s287 + $0x68] sm:$0xff] %vm982, %v979
      %997 = vst.msk [vmem:[%s287 + $0x70] sm:$0xff] %vm982, %v980
      %998 = vst.msk [vmem:[%s287 + $0x78] sm:$0xff] %vm982, %v981
      %v999 = vld [vmem:[%s292] sm:$0xff]
      %v1000 = vld [vmem:[%s292 + $0x8] sm:$0xff]
      %v1001 = vld [vmem:[%s292 + $0x10] sm:$0xff]
      %v1002 = vld [vmem:[%s292 + $0x18] sm:$0xff]
      %v1003 = vld [vmem:[%s292 + $0x20] sm:$0xff]
      %v1004 = vld [vmem:[%s292 + $0x28] sm:$0xff]
      %v1005 = vld [vmem:[%s292 + $0x30] sm:$0xff]
      %v1006 = vld [vmem:[%s292 + $0x38] sm:$0xff]
      %v1007 = vld [vmem:[%s292 + $0x40] sm:$0xff]
      %v1008 = vld [vmem:[%s292 + $0x48] sm:$0xff]
      %v1009 = vld [vmem:[%s292 + $0x50] sm:$0xff]
      %v1010 = vld [vmem:[%s292 + $0x58] sm:$0xff]
      %v1011 = vld [vmem:[%s292 + $0x60] sm:$0xff]
      %v1012 = vld [vmem:[%s292 + $0x68] sm:$0xff]
      %v1013 = vld [vmem:[%s292 + $0x70] sm:$0xff]
      %v1014 = vld [vmem:[%s292 + $0x78] sm:$0xff]
      %v1015 = vmul.f32 %v808, %v808
      %v1016 = vmul.f32 %v810, %v810
      %v1017 = vmul.f32 %v814, %v814
      %v1018 = vmul.f32 %v816, %v816
      %v1019 = vmul.f32 %v820, %v820
      %v1020 = vmul.f32 %v822, %v822
      %v1021 = vmul.f32 %v826, %v826
      %v1022 = vmul.f32 %v828, %v828
      %v1023 = vmul.f32 %v832, %v832
      %v1024 = vmul.f32 %v834, %v834
      %v1025 = vmul.f32 %v838, %v838
      %v1026 = vmul.f32 %v840, %v840
      %v1027 = vmul.f32 %v844, %v844
      %v1028 = vmul.f32 %v846, %v846
      %v1029 = vmul.f32 %v850, %v850
      %v1030 = vmul.f32 %v852, %v852
      %v1031 = vmul.f32 %v856, %v856
      %v1032 = vmul.f32 %v858, %v858
      %v1033 = vmul.f32 %v862, %v862
      %v1034 = vmul.f32 %v864, %v864
      %v1035 = vmul.f32 %v868, %v868
      %v1036 = vmul.f32 %v870, %v870
      %v1037 = vmul.f32 %v874, %v874
      %v1038 = vmul.f32 %v876, %v876
      %v1039 = vmul.f32 %v880, %v880
      %v1040 = vmul.f32 %v882, %v882
      %v1041 = vmul.f32 %v886, %v886
      %v1042 = vmul.f32 %v888, %v888
      %v1043 = vmul.f32 %v892, %v892
      %v1044 = vmul.f32 %v894, %v894
      %v1045 = vmul.f32 %v898, %v898
      %v1046 = vmul.f32 %v900, %v900
      %v1047 = vadd.f32 %v1015, %v1016
      %1048 = vadd.xlane.f32.xlu0 %v1047
      %v1049 = vpop.xlane.xlu0 %1048
      %v1050 = vadd.f32 %v1017, %v1018
      %1051 = vadd.xlane.f32.xlu0 %v1050
      %v1052 = vpop.xlane.xlu0 %1051
      %v1053 = vadd.f32 %v1019, %v1020
      %1054 = vadd.xlane.f32.xlu0 %v1053
      %v1055 = vpop.xlane.xlu0 %1054
      %v1056 = vadd.f32 %v1021, %v1022
      %1057 = vadd.xlane.f32.xlu0 %v1056
      %v1058 = vpop.xlane.xlu0 %1057
      %v1059 = vadd.f32 %v1023, %v1024
      %1060 = vadd.xlane.f32.xlu0 %v1059
      %v1061 = vpop.xlane.xlu0 %1060
      %v1062 = vadd.f32 %v1025, %v1026
      %1063 = vadd.xlane.f32.xlu0 %v1062
      %v1064 = vpop.xlane.xlu0 %1063
      %v1065 = vadd.f32 %v1027, %v1028
      %1066 = vadd.xlane.f32.xlu0 %v1065
      %v1067 = vpop.xlane.xlu0 %1066
      %v1068 = vadd.f32 %v1029, %v1030
      %1069 = vadd.xlane.f32.xlu0 %v1068
      %v1070 = vpop.xlane.xlu0 %1069
      %v1071 = vadd.f32 %v1031, %v1032
      %1072 = vadd.xlane.f32.xlu0 %v1071
      %v1073 = vpop.xlane.xlu0 %1072
      %v1074 = vadd.f32 %v1033, %v1034
      %1075 = vadd.xlane.f32.xlu0 %v1074
      %v1076 = vpop.xlane.xlu0 %1075
      %v1077 = vadd.f32 %v1035, %v1036
      %1078 = vadd.xlane.f32.xlu0 %v1077
      %v1079 = vpop.xlane.xlu0 %1078
      %v1080 = vadd.f32 %v1037, %v1038
      %1081 = vadd.xlane.f32.xlu0 %v1080
      %v1082 = vpop.xlane.xlu0 %1081
      %v1083 = vadd.f32 %v1039, %v1040
      %1084 = vadd.xlane.f32.xlu0 %v1083
      %v1085 = vpop.xlane.xlu0 %1084
      %v1086 = vadd.f32 %v1041, %v1042
      %1087 = vadd.xlane.f32.xlu0 %v1086
      %v1088 = vpop.xlane.xlu0 %1087
      %v1089 = vadd.f32 %v1043, %v1044
      %1090 = vadd.xlane.f32.xlu0 %v1089
      %v1091 = vpop.xlane.xlu0 %1090
      %v1092 = vadd.f32 %v1045, %v1046
      %1093 = vadd.xlane.f32.xlu0 %v1092
      %v1094 = vpop.xlane.xlu0 %1093
      %v1095 = vadd.f32 %v999, %v1049
      %v1096 = vadd.f32 %v1000, %v1052
      %v1097 = vadd.f32 %v1001, %v1055
      %v1098 = vadd.f32 %v1002, %v1058
      %v1099 = vadd.f32 %v1003, %v1061
      %v1100 = vadd.f32 %v1004, %v1064
      %v1101 = vadd.f32 %v1005, %v1067
      %v1102 = vadd.f32 %v1006, %v1070
      %v1103 = vadd.f32 %v1007, %v1073
      %v1104 = vadd.f32 %v1008, %v1076
      %v1105 = vadd.f32 %v1009, %v1079
      %v1106 = vadd.f32 %v1010, %v1082
      %v1107 = vadd.f32 %v1011, %v1085
      %v1108 = vadd.f32 %v1012, %v1088
      %v1109 = vadd.f32 %v1013, %v1091
      %v1110 = vadd.f32 %v1014, %v1094
      %1111 = vst.msk [vmem:[%s292] sm:$0xff] %vm982, %v1095
      %1112 = vst.msk [vmem:[%s292 + $0x8] sm:$0xff] %vm982, %v1096
      %1113 = vst.msk [vmem:[%s292 + $0x10] sm:$0xff] %vm982, %v1097
      %1114 = vst.msk [vmem:[%s292 + $0x18] sm:$0xff] %vm982, %v1098
      %1115 = vst.msk [vmem:[%s292 + $0x20] sm:$0xff] %vm982, %v1099
      %1116 = vst.msk [vmem:[%s292 + $0x28] sm:$0xff] %vm982, %v1100
      %1117 = vst.msk [vmem:[%s292 + $0x30] sm:$0xff] %vm982, %v1101
      %1118 = vst.msk [vmem:[%s292 + $0x38] sm:$0xff] %vm982, %v1102
      %1119 = vst.msk [vmem:[%s292 + $0x40] sm:$0xff] %vm982, %v1103
      %1120 = vst.msk [vmem:[%s292 + $0x48] sm:$0xff] %vm982, %v1104
      %1121 = vst.msk [vmem:[%s292 + $0x50] sm:$0xff] %vm982, %v1105
      %1122 = vst.msk [vmem:[%s292 + $0x58] sm:$0xff] %vm982, %v1106
      %1123 = vst.msk [vmem:[%s292 + $0x60] sm:$0xff] %vm982, %v1107
      %1124 = vst.msk [vmem:[%s292 + $0x68] sm:$0xff] %vm982, %v1108
      %1125 = vst.msk [vmem:[%s292 + $0x70] sm:$0xff] %vm982, %v1109
      %1126 = vst.msk [vmem:[%s292 + $0x78] sm:$0xff] %vm982, %v1110
      %p1127 = scmp.lt.s32.totalorder %s22, 1
      %s1128 = scalar_select %p1127, %s22, 1
      %s1129 = smul.addr %s1128, 16
      %s1130 = smul.addr %s1129, 8
      %s1131 = scalar_lea.vmem %s5, %s1130
      %p1132 = scmp.lt.s32.totalorder %s22, 1
      %s1133 = scalar_select %p1132, %s22, 1
      %s1134 = smul.addr %s1133, 16
      %s1135 = smul.addr %s1134, 8
      %s1136 = scalar_lea.vmem %s6, %s1135
      // Predicated region
      $region45: #{tpu_custom_call.1} parent=39 // pred_check
        %p1137 = pneg %p160
      $region46: #{tpu_custom_call.1} parent=39 // pred_check_branch
        %1139 = sbr.rel (%p1137) target = $region48
      $region47: #{tpu_custom_call.1} parent=39 // pred_region
        _
      $region48: #{tpu_custom_call.1} parent=39 // pred_fallthru
        _
      // Predicated region
      $region49: #{tpu_custom_call.1} parent=39 // pred_check
        %p1140 = pneg %p186
      $region50: #{tpu_custom_call.1} parent=39 // pred_check_branch
        %1142 = sbr.rel (%p1140) target = $region52
      $region51: #{tpu_custom_call.1} parent=39 // pred_region
        _
      $region52: #{tpu_custom_call.1} parent=39 // pred_fallthru
        _
    $region40: #{tpu_custom_call.1} parent=5 // pred_fallthru
      _
    %p1143 = scmp.le.s32.totalorder 2, %s13
    // Predicated region
    $region53: #{tpu_custom_call.1} parent=5 // pred_check
      %p1144 = pneg %p1143
    $region54: #{tpu_custom_call.1} parent=5 // pred_check_branch
      %1146 = sbr.rel (%p1144) target = $region56
    $region55: #{tpu_custom_call.1} parent=5 // pred_region
      %s1147 = ssub.s32 %s13, 2
      // Predicated region
      $region57: #{tpu_custom_call.1} parent=55 // pred_check
        %p1148 = pneg %p166
      $region58: #{tpu_custom_call.1} parent=55 // pred_check_branch
        %1150 = sbr.rel (%p1148) target = $region60
      $region59: #{tpu_custom_call.1} parent=55 // pred_region
        %p1151 = scmp.lt.s32.totalorder %s24, 1
        %s1152 = scalar_select %p1151, %s24, 1
        %s1153 = smul.addr %s1152, 16
        %s1154 = smul.addr %s1153, 8
        %s1155 = scalar_lea.vmem %s5, %s1154
      $region60: #{tpu_custom_call.1} parent=55 // pred_fallthru
        _
      // Predicated region
      $region61: #{tpu_custom_call.1} parent=55 // pred_check
        %p1156 = pneg %p192
      $region62: #{tpu_custom_call.1} parent=55 // pred_check_branch
        %1158 = sbr.rel (%p1156) target = $region64
      $region63: #{tpu_custom_call.1} parent=55 // pred_region
        %p1159 = scmp.lt.s32.totalorder %s24, 1
        %s1160 = scalar_select %p1159, %s24, 1
        %s1161 = smul.addr %s1160, 16
        %s1162 = smul.addr %s1161, 8
        %s1163 = scalar_lea.vmem %s6, %s1162
      $region64: #{tpu_custom_call.1} parent=55 // pred_fallthru
        _
    $region56: #{tpu_custom_call.1} parent=5 // pred_fallthru
      _
  $region6: #{tpu_custom_call.1} parent=0 // loop_footer
    %s17 = sadd.s32 1, %s13
  $region7: #{tpu_custom_call.1} parent=0 // loop_footer_branch
    %12 = sbr.rel target = $region3
  $region8: #{tpu_custom_call.1} parent=0 // loop_exit
    _

</llo_original>
